<compile_context>
chip_gen: v5e
topology: v5e:2x2
jax: 0.10.0
libtpu: 0.0.40
codegen_flags: <defaults>
</compile_context>

<pallas_src>
import jax
import jax.numpy as jnp
from jax.experimental import pallas as pl
from jax.experimental.pallas import tpu as pltpu

_LANE = 128


def _fdl_partial_sums_kernel(p_ref, g_ref, num_ref, pg1_ref, p1g_ref):
    """Accumulate per-class partial sums over the N-tile grid axis.

    p_ref, g_ref                : (C, R, 128) f32 VMEM input tiles
    num_ref, pg1_ref, p1g_ref   : (C, 1) f32 VMEM accumulators (resident across
                                  the N-tile axis; written back once per batch).
    """
    @pl.when(pl.program_id(1) == 0)
    def _init():
        num_ref[...] = jnp.zeros_like(num_ref)
        pg1_ref[...] = jnp.zeros_like(pg1_ref)
        p1g_ref[...] = jnp.zeros_like(p1g_ref)

    p = p_ref[...]
    g = g_ref[...]
    pg = p * g
    omp = 1.0 - p

    def rsum(x):  # (C, R, 128) -> (C, 1)   lane reduce, then sublane reduce
        return jnp.sum(jnp.sum(x, axis=2), axis=1, keepdims=True)

    num_ref[...] += rsum(pg * omp * omp)   # p0 * g0 * (1 - p0)^2
    pg1_ref[...] += rsum(p - pg)           # p0 * g1  == p - p*g
    p1g_ref[...] += rsum(g - pg)           # p1 * g0  == g - p*g


def _pick_row_tile(m, max_rows):
    """Pick the sublane-row tile R over the (M, 128) pixel view; return (R, M_padded)."""
    if m <= max_rows:
        return m, m                       # single tile; R == full dim is always legal
    for r in range(max_rows, 7, -8):      # R must be a multiple of 8 when R < M
        if m % r == 0:
            return r, m
    r = max_rows
    return r, -(-m // r) * r              # pad M up (zero padding contributes 0 to sums)


def anat_focal_d_loss(y_pred, y_true, weights=1.0):
    """y_pred: probabilities in (0,1), shape (B, C, *spatial). y_true: {0,1} floats."""
    B, C = y_pred.shape[0], y_pred.shape[1]
    N = 1
    for d in y_pred.shape[2:]:
        N *= d

    p = y_pred.reshape(B, C, N).astype(jnp.float32)   # free reshape, no transpose
    g = y_true.reshape(B, C, N).astype(jnp.float32)

    # ---- tiling: pixel axis -> (M rows, 128 lanes), row-tiles of R (~2 MiB/input) ----
    M = pl.cdiv(N, _LANE)
    max_rows = max(8, min(1024, (2 * 1024 * 1024) // (C * _LANE * 4)))
    max_rows = (max_rows // 8) * 8
    R, M_pad = _pick_row_tile(M, max_rows)

    N_pad = M_pad * _LANE
    if N_pad != N:
        # zero padding is exact: p=0,g=0 contribute 0 to every accumulated sum
        p = jnp.pad(p, ((0, 0), (0, 0), (0, N_pad - N)))
        g = jnp.pad(g, ((0, 0), (0, 0), (0, N_pad - N)))

    p4 = p.reshape(B, C, M_pad, _LANE)
    g4 = g.reshape(B, C, M_pad, _LANE)

    grid = (B, M_pad // R)

    num_b, pg1_b, p1g_b = pl.pallas_call(
        _fdl_partial_sums_kernel,
        out_shape=(
            jax.ShapeDtypeStruct((B, C, 1), jnp.float32),
            jax.ShapeDtypeStruct((B, C, 1), jnp.float32),
            jax.ShapeDtypeStruct((B, C, 1), jnp.float32),
        ),
        grid=grid,
        in_specs=[
            pl.BlockSpec((None, C, R, _LANE), lambda b, nt: (b, 0, nt, 0)),
            pl.BlockSpec((None, C, R, _LANE), lambda b, nt: (b, 0, nt, 0)),
        ],
        out_specs=(
            pl.BlockSpec((None, C, 1), lambda b, nt: (b, 0, 0)),
            pl.BlockSpec((None, C, 1), lambda b, nt: (b, 0, 0)),
            pl.BlockSpec((None, C, 1), lambda b, nt: (b, 0, 0)),
        ),
        compiler_params=pltpu.CompilerParams(
            dimension_semantics=("parallel", "arbitrary")),
    )(p4, g4)

    # ---- tiny O(C) epilogue (matches the PyTorch math exactly) ----
    num = jnp.sum(num_b[..., 0], axis=0)          # (C,)  summed over batch
    a = jnp.sum(pg1_b[..., 0], axis=0)            # sum p0*g1
    bb = jnp.sum(p1g_b[..., 0], axis=0)           # sum p1*g0

    # NOTE: module default weights=1 (scalar); a per-class (C,) vector also works.
    flag = jnp.asarray(weights, dtype=jnp.float32)
    den = num + 0.5 * a + 0.5 * bb
    T = jnp.sum(num * flag / (den + 1e-6))
    return 1.6 * (jnp.sum(flag) - T)
    # TODO(synk): the PyTorch forward moves tensors with .cpu(); that device
    # transfer has no meaning here and is intentionally omitted.


def _reference_loss(y_pred, y_true, weights=1.0):
    """Pure-JAX reference mirroring fdl_loss_wmask, for sanity checking."""
    p0 = y_pred.astype(jnp.float32)
    g0 = y_true.astype(jnp.float32)
    p1 = 1.0 - p0
    g1 = 1.0 - g0
    axes = (0,) + tuple(range(2, y_pred.ndim))
    num = jnp.sum(p0 * g0 * (1.0 - p0) ** 2, axis=axes)
    den = num + 0.5 * jnp.sum(p0 * g1, axis=axes) + 0.5 * jnp.sum(p1 * g0, axis=axes)
    flag = jnp.asarray(weights, dtype=jnp.float32)
    T = jnp.sum(num * flag / (den + 1e-6))
    return 1.6 * (jnp.sum(flag) - T)


if __name__ == "__main__":
    key = jax.random.PRNGKey(0)
    k1, k2 = jax.random.split(key)

    # 5-D (B, C, D, H, W) as implied by the torch sums over dims 4,3,2,0.
    B, C, D, H, W = 2, 4, 4, 8, 8
    logits = jax.nn.sigmoid(jax.random.normal(k1, (B, C, D, H, W), dtype=jnp.float32))
    targets = (jax.random.uniform(k2, (B, C, D, H, W)) > 0.5).astype(jnp.float32)

    out = anat_focal_d_loss(logits, targets)
    out = jax.block_until_ready(out)

    ref = jax.block_until_ready(_reference_loss(logits, targets))
    assert jnp.allclose(out, ref, rtol=1e-5, atol=1e-5), (out, ref)

    print("KERNEL_OK")
</pallas_src>

<mosaic_0001>
module attributes {stable_mosaic.version = 11 : i64} {
  func.func @_fdl_partial_sums_kernel(%arg0: i32, %arg1: i32, %arg2: memref<1x4x2x128xf32, #tpu.memory_space<vmem>>, %arg3: memref<1x4x2x128xf32, #tpu.memory_space<vmem>>, %arg4: memref<1x4x1xf32, #tpu.memory_space<vmem>>, %arg5: memref<1x4x1xf32, #tpu.memory_space<vmem>>, %arg6: memref<1x4x1xf32, #tpu.memory_space<vmem>>) attributes {dimension_semantics = [#tpu.dimension_semantics<parallel>, #tpu.dimension_semantics<arbitrary>], iteration_bounds = array<i64: 2, 1>, scalar_prefetch = 0 : i64, scratch_operands = 0 : i64, tpu.core_type = #tpu.core_type<tc>, window_params = [{transform_indices = @transform_0, window_bounds = array<i64: 1, 4, 2, 128>}, {transform_indices = @transform_1, window_bounds = array<i64: 1, 4, 2, 128>}, {transform_indices = @transform_2, window_bounds = array<i64: 1, 4, 1>}, {transform_indices = @transform_3, window_bounds = array<i64: 1, 4, 1>}, {transform_indices = @transform_4, window_bounds = array<i64: 1, 4, 1>}]} {
    %c0_i32 = arith.constant 0 : i32
    %0 = arith.cmpi eq, %arg1, %c0_i32 : i32
    %1 = arith.extui %0 : i1 to i32
    %c0_i32_0 = arith.constant 0 : i32
    %2 = arith.cmpi ne, %1, %c0_i32_0 : i32
    scf.if %2 {
      %cst_32 = arith.constant 0.000000e+00 : f32
      %41 = vector.broadcast %cst_32 : f32 to vector<4x1xf32>
      %c0_33 = arith.constant 0 : index
      %c0_34 = arith.constant 0 : index
      %c0_35 = arith.constant 0 : index
      %42 = vector.load %arg4[%c0_33, %c0_34, %c0_35] : memref<1x4x1xf32, #tpu.memory_space<vmem>>, vector<1x4x1xf32>
      %43 = vector.shape_cast %42 : vector<1x4x1xf32> to vector<4x1xf32>
      %44 = vector.shape_cast %41 : vector<4x1xf32> to vector<1x4x1xf32>
      tpu.vector_store %arg4[%c0_33, %c0_34, %c0_35], %44 {strides = array<i32>} : memref<1x4x1xf32, #tpu.memory_space<vmem>>, vector<1x4x1xf32>,
      %cst_36 = arith.constant 0.000000e+00 : f32
      %45 = vector.broadcast %cst_36 : f32 to vector<4x1xf32>
      %c0_37 = arith.constant 0 : index
      %c0_38 = arith.constant 0 : index
      %c0_39 = arith.constant 0 : index
      %46 = vector.load %arg5[%c0_37, %c0_38, %c0_39] : memref<1x4x1xf32, #tpu.memory_space<vmem>>, vector<1x4x1xf32>
      %47 = vector.shape_cast %46 : vector<1x4x1xf32> to vector<4x1xf32>
      %48 = vector.shape_cast %45 : vector<4x1xf32> to vector<1x4x1xf32>
      tpu.vector_store %arg5[%c0_37, %c0_38, %c0_39], %48 {strides = array<i32>} : memref<1x4x1xf32, #tpu.memory_space<vmem>>, vector<1x4x1xf32>,
      %cst_40 = arith.constant 0.000000e+00 : f32
      %49 = vector.broadcast %cst_40 : f32 to vector<4x1xf32>
      %c0_41 = arith.constant 0 : index
      %c0_42 = arith.constant 0 : index
      %c0_43 = arith.constant 0 : index
      %50 = vector.load %arg6[%c0_41, %c0_42, %c0_43] : memref<1x4x1xf32, #tpu.memory_space<vmem>>, vector<1x4x1xf32>
      %51 = vector.shape_cast %50 : vector<1x4x1xf32> to vector<4x1xf32>
      %52 = vector.shape_cast %49 : vector<4x1xf32> to vector<1x4x1xf32>
      tpu.vector_store %arg6[%c0_41, %c0_42, %c0_43], %52 {strides = array<i32>} : memref<1x4x1xf32, #tpu.memory_space<vmem>>, vector<1x4x1xf32>,
    } else {
    }
    %c0 = arith.constant 0 : index
    %c0_1 = arith.constant 0 : index
    %c0_2 = arith.constant 0 : index
    %c0_3 = arith.constant 0 : index
    %3 = vector.load %arg2[%c0, %c0_1, %c0_2, %c0_3] : memref<1x4x2x128xf32, #tpu.memory_space<vmem>>, vector<1x4x2x128xf32>
    %4 = vector.shape_cast %3 : vector<1x4x2x128xf32> to vector<4x2x128xf32>
    %c0_4 = arith.constant 0 : index
    %c0_5 = arith.constant 0 : index
    %c0_6 = arith.constant 0 : index
    %c0_7 = arith.constant 0 : index
    %5 = vector.load %arg3[%c0_4, %c0_5, %c0_6, %c0_7] : memref<1x4x2x128xf32, #tpu.memory_space<vmem>>, vector<1x4x2x128xf32>
    %6 = vector.shape_cast %5 : vector<1x4x2x128xf32> to vector<4x2x128xf32>
    %7 = arith.mulf %4, %6 : vector<4x2x128xf32>
    %cst = arith.constant 1.000000e+00 : f32
    %8 = vector.broadcast %cst : f32 to vector<4x2x128xf32>
    %9 = arith.subf %8, %4 : vector<4x2x128xf32>
    %c0_8 = arith.constant 0 : index
    %c0_9 = arith.constant 0 : index
    %c0_10 = arith.constant 0 : index
    %10 = vector.load %arg4[%c0_8, %c0_9, %c0_10] : memref<1x4x1xf32, #tpu.memory_space<vmem>>, vector<1x4x1xf32>
    %11 = vector.shape_cast %10 : vector<1x4x1xf32> to vector<4x1xf32>
    %12 = arith.mulf %7, %9 : vector<4x2x128xf32>
    %13 = arith.mulf %12, %9 : vector<4x2x128xf32>
    %cst_11 = arith.constant dense<0.000000e+00> : vector<4x2xf32>
    %14 = vector.multi_reduction <add>, %13, %cst_11 [2] : vector<4x2x128xf32> to vector<4x2xf32>
    %cst_12 = arith.constant dense<0.000000e+00> : vector<4xf32>
    %15 = vector.multi_reduction <add>, %14, %cst_12 [1] : vector<4x2xf32> to vector<4xf32>
    %16 = vector.shape_cast %15 : vector<4xf32> to vector<4x1xf32>
    %17 = arith.addf %11, %16 : vector<4x1xf32>
    %c0_13 = arith.constant 0 : index
    %c0_14 = arith.constant 0 : index
    %c0_15 = arith.constant 0 : index
    %18 = vector.load %arg4[%c0_13, %c0_14, %c0_15] : memref<1x4x1xf32, #tpu.memory_space<vmem>>, vector<1x4x1xf32>
    %19 = vector.shape_cast %18 : vector<1x4x1xf32> to vector<4x1xf32>
    %20 = vector.shape_cast %17 : vector<4x1xf32> to vector<1x4x1xf32>
    tpu.vector_store %arg4[%c0_13, %c0_14, %c0_15], %20 {strides = array<i32>} : memref<1x4x1xf32, #tpu.memory_space<vmem>>, vector<1x4x1xf32>,
    %c0_16 = arith.constant 0 : index
    %c0_17 = arith.constant 0 : index
    %c0_18 = arith.constant 0 : index
    %21 = vector.load %arg5[%c0_16, %c0_17, %c0_18] : memref<1x4x1xf32, #tpu.memory_space<vmem>>, vector<1x4x1xf32>
    %22 = vector.shape_cast %21 : vector<1x4x1xf32> to vector<4x1xf32>
    %23 = arith.subf %4, %7 : vector<4x2x128xf32>
    %cst_19 = arith.constant dense<0.000000e+00> : vector<4x2xf32>
    %24 = vector.multi_reduction <add>, %23, %cst_19 [2] : vector<4x2x128xf32> to vector<4x2xf32>
    %cst_20 = arith.constant dense<0.000000e+00> : vector<4xf32>
    %25 = vector.multi_reduction <add>, %24, %cst_20 [1] : vector<4x2xf32> to vector<4xf32>
    %26 = vector.shape_cast %25 : vector<4xf32> to vector<4x1xf32>
    %27 = arith.addf %22, %26 : vector<4x1xf32>
    %c0_21 = arith.constant 0 : index
    %c0_22 = arith.constant 0 : index
    %c0_23 = arith.constant 0 : index
    %28 = vector.load %arg5[%c0_21, %c0_22, %c0_23] : memref<1x4x1xf32, #tpu.memory_space<vmem>>, vector<1x4x1xf32>
    %29 = vector.shape_cast %28 : vector<1x4x1xf32> to vector<4x1xf32>
    %30 = vector.shape_cast %27 : vector<4x1xf32> to vector<1x4x1xf32>
    tpu.vector_store %arg5[%c0_21, %c0_22, %c0_23], %30 {strides = array<i32>} : memref<1x4x1xf32, #tpu.memory_space<vmem>>, vector<1x4x1xf32>,
    %c0_24 = arith.constant 0 : index
    %c0_25 = arith.constant 0 : index
    %c0_26 = arith.constant 0 : index
    %31 = vector.load %arg6[%c0_24, %c0_25, %c0_26] : memref<1x4x1xf32, #tpu.memory_space<vmem>>, vector<1x4x1xf32>
    %32 = vector.shape_cast %31 : vector<1x4x1xf32> to vector<4x1xf32>
    %33 = arith.subf %6, %7 : vector<4x2x128xf32>
    %cst_27 = arith.constant dense<0.000000e+00> : vector<4x2xf32>
    %34 = vector.multi_reduction <add>, %33, %cst_27 [2] : vector<4x2x128xf32> to vector<4x2xf32>
    %cst_28 = arith.constant dense<0.000000e+00> : vector<4xf32>
    %35 = vector.multi_reduction <add>, %34, %cst_28 [1] : vector<4x2xf32> to vector<4xf32>
    %36 = vector.shape_cast %35 : vector<4xf32> to vector<4x1xf32>
    %37 = arith.addf %32, %36 : vector<4x1xf32>
    %c0_29 = arith.constant 0 : index
    %c0_30 = arith.constant 0 : index
    %c0_31 = arith.constant 0 : index
    %38 = vector.load %arg6[%c0_29, %c0_30, %c0_31] : memref<1x4x1xf32, #tpu.memory_space<vmem>>, vector<1x4x1xf32>
    %39 = vector.shape_cast %38 : vector<1x4x1xf32> to vector<4x1xf32>
    %40 = vector.shape_cast %37 : vector<4x1xf32> to vector<1x4x1xf32>
    tpu.vector_store %arg6[%c0_29, %c0_30, %c0_31], %40 {strides = array<i32>} : memref<1x4x1xf32, #tpu.memory_space<vmem>>, vector<1x4x1xf32>,
    return
  }
  func.func @transform_0(%arg0: i32, %arg1: i32) -> (i32, i32, i32, i32) {
    %c0_i32 = arith.constant 0 : i32
    %c0_i32_0 = arith.constant 0 : i32
    %c0_i32_1 = arith.constant 0 : i32
    return %arg0, %c0_i32, %arg1, %c0_i32_0 : i32, i32, i32, i32
  }
  func.func @transform_1(%arg0: i32, %arg1: i32) -> (i32, i32, i32, i32) {
    %c0_i32 = arith.constant 0 : i32
    %c0_i32_0 = arith.constant 0 : i32
    %c0_i32_1 = arith.constant 0 : i32
    return %arg0, %c0_i32, %arg1, %c0_i32_0 : i32, i32, i32, i32
  }
  func.func @transform_2(%arg0: i32, %arg1: i32) -> (i32, i32, i32) {
    %c0_i32 = arith.constant 0 : i32
    %c0_i32_0 = arith.constant 0 : i32
    %c0_i32_1 = arith.constant 0 : i32
    return %arg0, %c0_i32, %c0_i32_0 : i32, i32, i32
  }
  func.func @transform_3(%arg0: i32, %arg1: i32) -> (i32, i32, i32) {
    %c0_i32 = arith.constant 0 : i32
    %c0_i32_0 = arith.constant 0 : i32
    %c0_i32_1 = arith.constant 0 : i32
    return %arg0, %c0_i32, %c0_i32_0 : i32, i32, i32
  }
  func.func @transform_4(%arg0: i32, %arg1: i32) -> (i32, i32, i32) {
    %c0_i32 = arith.constant 0 : i32
    %c0_i32_0 = arith.constant 0 : i32
    %c0_i32_1 = arith.constant 0 : i32
    return %arg0, %c0_i32, %c0_i32_0 : i32, i32, i32
  }
}

</mosaic_0001>

<llo_original>
// kernel: tpu_custom_call.1
$region0: #{tpu_custom_call.1}
  #allocation0 [shape = 'u32[]', space=smem, size = 0x4, offset = 0x4, fixed_abs, tag = 'smem constant byte address 0x4 - core index']
  #allocation1 [shape = 'u32[72,128]{1,0:T(1,128)}', space=vmem, size = 0x9000, scoped, tag = 'internal scratch']
  %s0 = inlined_call_operand.hbm [shape: f32[2,4,2,128], index: 0, kind: input, shape index: {}]
  %s1 = inlined_call_operand.hbm [shape: f32[2,4,2,128], index: 1, kind: input, shape index: {}]
  %s2 = inlined_call_operand.vmem [shape: f32[2,4,1], index: 2, kind: output, shape index: {0}]
  %s3 = inlined_call_operand.vmem [shape: f32[2,4,1], index: 3, kind: output, shape index: {1}]
  %s4 = inlined_call_operand.vmem [shape: f32[2,4,1], index: 4, kind: output, shape index: {2}]
  %5 = xla_tuple %s2, %s3, %s4
  %s6 = sld [smem:[#allocation0]]
  $region69: #{tpu_custom_call.1} parent=0
    _
  %s8 = ssub.s32 1, %s6
  %s9 = scalar_select 0, %s8, %s6
  $region1: #{tpu_custom_call.1} parent=0
    #allocation2 [shape = 'u8[8192]{0}', space=vmem, size = 0x2000, scoped, tag = 'input window, operand 0']
    #allocation3 [shape = 's32[2]{0}', space=sflag, size = 0x8, scoped, tag = 'scoped memory for tpu_custom_call.1']
    #allocation4 [shape = 'u8[8192]{0}', space=vmem, size = 0x2000, scoped, tag = 'input window, operand 1']
    #allocation5 [shape = 's32[2]{0}', space=sflag, size = 0x8, scoped, tag = 'scoped memory for tpu_custom_call.1']
    %10 = vsyncpa [#allocation3], 0
    %s11 = scalar_lea.sflag [#allocation3], 1
    %12 = vsyncpa %s11, 0
    %13 = vsyncpa [#allocation5], 0
    %s14 = scalar_lea.sflag [#allocation5], 1
    %15 = vsyncpa %s14, 0
    loop: start=0, step=1, limit=4
    $region2: #{tpu_custom_call.1} parent=1 // loop_pre_header
      _
    $region3: #{tpu_custom_call.1} parent=1 // loop_header
      %s17 = sphi 0, %s21
      %p18 = scmp.ge.s32.totalorder %s17, 4
      %s24 = sphi 0, %s36
      %s25 = sphi 0, %s32
      %s26 = sphi 0, %s24
      %s27 = sphi 0, %s25
      %s28 = sphi 0, %s26
      %s29 = sphi 0, %s27
      %s41 = sphi 0, %s43
      %s44 = sphi 0, %s41
      %s45 = sphi 0, %s44
      %s61 = sphi 0, %s45
      %s69 = sphi 0, %s71
      %s72 = sphi 0, %s69
      %s73 = sphi 0, %s72
      %s89 = sphi 0, %s73
      %s95 = sphi 0, %s97
      %s98 = sphi 0, %s95
      %s99 = sphi 0, %s98
      %s115 = sphi 0, %s99
      %s121 = sphi 0, %s123
      %s124 = sphi 0, %s121
      %s125 = sphi 0, %s124
      %s141 = sphi 0, %s125
      %s147 = sphi 0, %s149
      %s150 = sphi 0, %s147
      %s151 = sphi 0, %s150
      %s167 = sphi 0, %s151
    $region4: #{tpu_custom_call.1} parent=1 // loop_header_branch
      %20 = sbr.rel (%p18) target = $region8
    $region5: #{tpu_custom_call.1} parent=1 // loop_body
      %s22 = ssub.s32 %s17, 1
      %s23 = ssub.s32 %s17, 2
      %s30 = sadd.s32 1, %s25
      %p31 = scmp.ge.s32.totalorder %s30, 1
      %s32 = scalar_select %p31, 0, %s30
      %s33 = sadd.s32 1, %s24
      %s34 = scalar_select %p31, %s33, %s24
      %p35 = scmp.ge.s32.totalorder %s34, 2
      %s36 = scalar_select %p35, 0, %s34
      %s37 = ssub.s32 %s24, %s36
      %s38 = ssub.s32 %s25, %s32
      %s39 = sor.u32 %s37, %s38
      %p40 = scmp.eq.s32.totalorder %s39, 0
      %s42 = sadd.s32 %s41, 1
      %s43 = scalar_select %p40, %s41, %s42
      %p46 = pneg %p40
      %p47 = scmp.eq.s32.totalorder %s17, 1
      %p48 = por %p46, %p47
      %p49 = scmp.ne.s32.totalorder %s41, %s44
      %p50 = scmp.eq.s32.totalorder %s17, 0
      %p51 = por %p49, %p50
      %p52 = scmp.ne.s32.totalorder %s41, %s44
      %p53 = scmp.eq.s32.totalorder %s22, 1
      %p54 = por %p52, %p53
      %p55 = scmp.ne.s32.totalorder %s44, %s45
      %p56 = scmp.eq.s32.totalorder %s22, 0
      %p57 = por %p55, %p56
      %p58 = scmp.ne.s32.totalorder %s44, %s45
      %p59 = scmp.eq.s32.totalorder %s23, 1
      %p60 = por %p58, %p59
      %p62 = scmp.ne.s32.totalorder %s45, %s61
      %p63 = scmp.eq.s32.totalorder %s23, 0
      %p64 = por %p62, %p63
      %s65 = ssub.s32 %s24, %s36
      %s66 = ssub.s32 %s25, %s32
      %s67 = sor.u32 %s65, %s66
      %p68 = scmp.eq.s32.totalorder %s67, 0
      %s70 = sadd.s32 %s69, 1
      %s71 = scalar_select %p68, %s69, %s70
      %p74 = pneg %p68
      %p75 = scmp.eq.s32.totalorder %s17, 1
      %p76 = por %p74, %p75
      %p77 = scmp.ne.s32.totalorder %s69, %s72
      %p78 = scmp.eq.s32.totalorder %s17, 0
      %p79 = por %p77, %p78
      %p80 = scmp.ne.s32.totalorder %s69, %s72
      %p81 = scmp.eq.s32.totalorder %s22, 1
      %p82 = por %p80, %p81
      %p83 = scmp.ne.s32.totalorder %s72, %s73
      %p84 = scmp.eq.s32.totalorder %s22, 0
      %p85 = por %p83, %p84
      %p86 = scmp.ne.s32.totalorder %s72, %s73
      %p87 = scmp.eq.s32.totalorder %s23, 1
      %p88 = por %p86, %p87
      %p90 = scmp.ne.s32.totalorder %s73, %s89
      %p91 = scmp.eq.s32.totalorder %s23, 0
      %p92 = por %p90, %p91
      %s93 = ssub.s32 %s24, %s36
      %p94 = scmp.eq.s32.totalorder %s93, 0
      %s96 = sadd.s32 %s95, 1
      %s97 = scalar_select %p94, %s95, %s96
      %p100 = pneg %p94
      %p101 = scmp.eq.s32.totalorder %s17, 1
      %p102 = por %p100, %p101
      %p103 = scmp.ne.s32.totalorder %s95, %s98
      %p104 = scmp.eq.s32.totalorder %s17, 0
      %p105 = por %p103, %p104
      %p106 = scmp.ne.s32.totalorder %s95, %s98
      %p107 = scmp.eq.s32.totalorder %s22, 1
      %p108 = por %p106, %p107
      %p109 = scmp.ne.s32.totalorder %s98, %s99
      %p110 = scmp.eq.s32.totalorder %s22, 0
      %p111 = por %p109, %p110
      %p112 = scmp.ne.s32.totalorder %s98, %s99
      %p113 = scmp.eq.s32.totalorder %s23, 1
      %p114 = por %p112, %p113
      %p116 = scmp.ne.s32.totalorder %s99, %s115
      %p117 = scmp.eq.s32.totalorder %s23, 0
      %p118 = por %p116, %p117
      %s119 = ssub.s32 %s24, %s36
      %p120 = scmp.eq.s32.totalorder %s119, 0
      %s122 = sadd.s32 %s121, 1
      %s123 = scalar_select %p120, %s121, %s122
      %p126 = pneg %p120
      %p127 = scmp.eq.s32.totalorder %s17, 1
      %p128 = por %p126, %p127
      %p129 = scmp.ne.s32.totalorder %s121, %s124
      %p130 = scmp.eq.s32.totalorder %s17, 0
      %p131 = por %p129, %p130
      %p132 = scmp.ne.s32.totalorder %s121, %s124
      %p133 = scmp.eq.s32.totalorder %s22, 1
      %p134 = por %p132, %p133
      %p135 = scmp.ne.s32.totalorder %s124, %s125
      %p136 = scmp.eq.s32.totalorder %s22, 0
      %p137 = por %p135, %p136
      %p138 = scmp.ne.s32.totalorder %s124, %s125
      %p139 = scmp.eq.s32.totalorder %s23, 1
      %p140 = por %p138, %p139
      %p142 = scmp.ne.s32.totalorder %s125, %s141
      %p143 = scmp.eq.s32.totalorder %s23, 0
      %p144 = por %p142, %p143
      %s145 = ssub.s32 %s24, %s36
      %p146 = scmp.eq.s32.totalorder %s145, 0
      %s148 = sadd.s32 %s147, 1
      %s149 = scalar_select %p146, %s147, %s148
      %p152 = pneg %p146
      %p153 = scmp.eq.s32.totalorder %s17, 1
      %p154 = por %p152, %p153
      %p155 = scmp.ne.s32.totalorder %s147, %s150
      %p156 = scmp.eq.s32.totalorder %s17, 0
      %p157 = por %p155, %p156
      %p158 = scmp.ne.s32.totalorder %s147, %s150
      %p159 = scmp.eq.s32.totalorder %s22, 1
      %p160 = por %p158, %p159
      %p161 = scmp.ne.s32.totalorder %s150, %s151
      %p162 = scmp.eq.s32.totalorder %s22, 0
      %p163 = por %p161, %p162
      %p164 = scmp.ne.s32.totalorder %s150, %s151
      %p165 = scmp.eq.s32.totalorder %s23, 1
      %p166 = por %p164, %p165
      %p168 = scmp.ne.s32.totalorder %s151, %s167
      %p169 = scmp.eq.s32.totalorder %s23, 0
      %p170 = por %p168, %p169
      %p171 = scmp.le.s32.totalorder 1, %s17
      %p172 = scmp.lt.s32.totalorder %s17, 3
      %p173 = pnand %p171, %p172
      %p174 = pneg %p173
      // Predicated region
      $region9: #{tpu_custom_call.1} parent=5 // pred_check
        _
      $region10: #{tpu_custom_call.1} parent=5 // pred_check_branch
        %176 = sbr.rel (%p173) target = $region12
      $region11: #{tpu_custom_call.1} parent=5 // pred_region
        %s177 = ssub.s32 %s17, 1
      $region12: #{tpu_custom_call.1} parent=5 // pred_fallthru
        _
      %p178 = scmp.lt.s32.totalorder %s17, 2
      // Predicated region
      $region13: #{tpu_custom_call.1} parent=5 // pred_check
        %p179 = pneg %p178
      $region14: #{tpu_custom_call.1} parent=5 // pred_check_branch
        %181 = sbr.rel (%p179) target = $region16
      $region15: #{tpu_custom_call.1} parent=5 // pred_region
        // Predicated region
        $region17: #{tpu_custom_call.1} parent=15 // pred_check
          %p182 = pneg %p51
        $region18: #{tpu_custom_call.1} parent=15 // pred_check_branch
          %184 = sbr.rel (%p182) target = $region20
        $region19: #{tpu_custom_call.1} parent=15 // pred_region
          %s185 = sand.u32 %s41, 1
          %s186 = scalar_lea.sflag [#allocation3], %s185
          %s187 = sand.u32 %s41, 1
          %s188 = smul.addr %s187, 8
          %s189 = scalar_lea.vmem [#allocation2], %s188
          %191 = vsyncadd %s186, 0
          %s192 = smul.addr %s24, 4
          %s193 = sadd.s32 %s25, %s192
          %s194 = smul.addr %s193, 2
          %s195 = scalar_lea.hbm %s0, %s194
          %s196 = sshll.u32 %s195, 4
          %s197 = int_to_ptr.hbm [resolvable:$true] %s196
          %s198 = sshll.u32 %s189, 4
          %s199 = int_to_ptr.vmem [resolvable:$true] %s198
          %204 = dma.hbm_to_vmem [thread:$0]  %s197, 128, %s199, %s186, 32, 32, 2
        $region20: #{tpu_custom_call.1} parent=15 // pred_fallthru
          _
        // Predicated region
        $region21: #{tpu_custom_call.1} parent=15 // pred_check
          %p205 = pneg %p79
        $region22: #{tpu_custom_call.1} parent=15 // pred_check_branch
          %207 = sbr.rel (%p205) target = $region24
        $region23: #{tpu_custom_call.1} parent=15 // pred_region
          %s208 = sand.u32 %s69, 1
          %s209 = scalar_lea.sflag [#allocation5], %s208
          %s210 = sand.u32 %s69, 1
          %s211 = smul.addr %s210, 8
          %s212 = scalar_lea.vmem [#allocation4], %s211
          %214 = vsyncadd %s209, 0
          %s215 = smul.addr %s24, 4
          %s216 = sadd.s32 %s25, %s215
          %s217 = smul.addr %s216, 2
          %s218 = scalar_lea.hbm %s1, %s217
          %s219 = sshll.u32 %s218, 4
          %s220 = int_to_ptr.hbm [resolvable:$true] %s219
          %s221 = sshll.u32 %s212, 4
          %s222 = int_to_ptr.vmem [resolvable:$true] %s221
          %227 = dma.hbm_to_vmem [thread:$0]  %s220, 128, %s222, %s209, 32, 32, 2
        $region24: #{tpu_custom_call.1} parent=15 // pred_fallthru
          _
      $region16: #{tpu_custom_call.1} parent=5 // pred_fallthru
        _
      %p228 = scmp.le.s32.totalorder 1, %s17
      %p229 = scmp.lt.s32.totalorder %s17, 3
      %p230 = pnand %p228, %p229
      %p231 = pneg %p230
      // Predicated region
      $region25: #{tpu_custom_call.1} parent=5 // pred_check
        _
      $region26: #{tpu_custom_call.1} parent=5 // pred_check_branch
        %233 = sbr.rel (%p230) target = $region28
      $region27: #{tpu_custom_call.1} parent=5 // pred_region
        %s234 = ssub.s32 %s17, 1
        %s235 = sand.u32 %s44, 1
        %s236 = scalar_lea.sflag [#allocation3], %s235
        %s237 = sand.u32 %s44, 1
        %s238 = smul.addr %s237, 8
        %s239 = scalar_lea.vmem [#allocation2], %s238
        // Predicated region
        $region29: #{tpu_custom_call.1} parent=27 // pred_check
          %p240 = pneg %p57
        $region30: #{tpu_custom_call.1} parent=27 // pred_check_branch
          %242 = sbr.rel (%p240) target = $region32
        $region31: #{tpu_custom_call.1} parent=27 // pred_region
          %244 = dma.done %s236, 128
        $region32: #{tpu_custom_call.1} parent=27 // pred_fallthru
          _
        %s245 = sand.u32 %s72, 1
        %s246 = scalar_lea.sflag [#allocation5], %s245
        %s247 = sand.u32 %s72, 1
        %s248 = smul.addr %s247, 8
        %s249 = scalar_lea.vmem [#allocation4], %s248
        // Predicated region
        $region33: #{tpu_custom_call.1} parent=27 // pred_check
          %p250 = pneg %p85
        $region34: #{tpu_custom_call.1} parent=27 // pred_check_branch
          %252 = sbr.rel (%p250) target = $region36
        $region35: #{tpu_custom_call.1} parent=27 // pred_region
          %254 = dma.done %s246, 128
        $region36: #{tpu_custom_call.1} parent=27 // pred_fallthru
          _
        %s255 = sand.u32 %s44, 1
        %s256 = scalar_lea.sflag [#allocation3], %s255
        %s257 = sand.u32 %s44, 1
        %s258 = smul.addr %s257, 8
        %s259 = scalar_lea.vmem [#allocation2], %s258
        %p260 = pneg %p57
        %p261 = pneg %p54
        %s262 = sand.u32 %s72, 1
        %s263 = scalar_lea.sflag [#allocation5], %s262
        %s264 = sand.u32 %s72, 1
        %s265 = smul.addr %s264, 8
        %s266 = scalar_lea.vmem [#allocation4], %s265
        %p267 = pneg %p85
        %p268 = pneg %p82
        %p269 = pneg %p111
        %p270 = pneg %p108
        %p271 = scmp.lt.s32.totalorder %s26, 1
        %s272 = scalar_select %p271, %s26, 1
        %s273 = smul.addr %s272, 4
        %s274 = scalar_lea.vmem %s2, %s273
        %p275 = pneg %p137
        %p276 = pneg %p134
        %p277 = scmp.lt.s32.totalorder %s26, 1
        %s278 = scalar_select %p277, %s26, 1
        %s279 = smul.addr %s278, 4
        %s280 = scalar_lea.vmem %s3, %s279
        %p281 = pneg %p163
        %p282 = pneg %p160
        %p283 = scmp.lt.s32.totalorder %s26, 1
        %s284 = scalar_select %p283, %s26, 1
        %s285 = smul.addr %s284, 4
        %s286 = scalar_lea.vmem %s4, %s285
        %p287 = scmp.lt.s32.totalorder %s26, 1
        %s288 = scalar_select %p287, %s26, 1
        %s289 = smul.addr %s288, 4
        %s290 = scalar_lea.vmem %s2, %s289
        %p291 = scmp.lt.s32.totalorder %s26, 1
        %s292 = scalar_select %p291, %s26, 1
        %s293 = smul.addr %s292, 4
        %s294 = scalar_lea.vmem %s3, %s293
        %p295 = scmp.lt.s32.totalorder %s26, 1
        %s296 = scalar_select %p295, %s26, 1
        %s297 = smul.addr %s296, 4
        %s298 = scalar_lea.vmem %s4, %s297
        %p299 = scmp.eq.s32.totalorder %s27, 0
        // Predicated region
        $region37: #{tpu_custom_call.1} parent=27 // pred_check
          %p300 = pneg %p299
        $region38: #{tpu_custom_call.1} parent=27 // pred_check_branch
          %302 = sbr.rel (%p300) target = $region40
        $region39: #{tpu_custom_call.1} parent=27 // pred_region
          %vm303 = vcmask 3072
          %304 = vst.msk [vmem:[%s290] sm:$0xf] %vm303, 0.0
          %305 = vst.msk [vmem:[%s294] sm:$0xf] %vm303, 0.0
          %306 = vst.msk [vmem:[%s298] sm:$0xf] %vm303, 0.0
        $region40: #{tpu_custom_call.1} parent=27 // pred_fallthru
          _
        %v307 = vld [vmem:[%s239] sm:$0x3]
        %v308 = vld [vmem:[%s239 + $0x2] sm:$0x3]
        %v309 = vld [vmem:[%s239 + $0x4] sm:$0x3]
        %v310 = vld [vmem:[%s239 + $0x6] sm:$0x3]
        %v311 = vld [vmem:[%s249] sm:$0x3]
        %v312 = vld [vmem:[%s249 + $0x2] sm:$0x3]
        %v313 = vld [vmem:[%s249 + $0x4] sm:$0x3]
        %v314 = vld [vmem:[%s249 + $0x6] sm:$0x3]
        %v315 = vmul.f32 %v307, %v311
        %v316 = vmul.f32 %v308, %v312
        %v317 = vmul.f32 %v309, %v313
        %v318 = vmul.f32 %v310, %v314
        %v319 = vsub.f32 1.0, %v307
        %v320 = vsub.f32 1.0, %v308
        %v321 = vsub.f32 1.0, %v309
        %v322 = vsub.f32 1.0, %v310
        %v323 = vld [vmem:[%s290] sm:$0xf]
        %v324 = vmul.f32 %v315, %v319
        %v325 = vmul.f32 %v316, %v320
        %v326 = vmul.f32 %v317, %v321
        %v327 = vmul.f32 %v318, %v322
        %v328 = vmul.f32 %v324, %v319
        %v329 = vmul.f32 %v325, %v320
        %v330 = vmul.f32 %v326, %v321
        %v331 = vmul.f32 %v327, %v322
        %vm332 = vcmask 1041408
        %v333 = vsel %vm332, %v328, 0.0
        %334 = vadd.xlane.f32.xlu0 %v333
        %v335 = vpop.xlane.xlu0 %334
        %v336 = vsel %vm332, %v329, 0.0
        %337 = vadd.xlane.f32.xlu0 %v336
        %v338 = vpop.xlane.xlu0 %337
        %v339 = vsel %vm332, %v330, 0.0
        %340 = vadd.xlane.f32.xlu0 %v339
        %v341 = vpop.xlane.xlu0 %340
        %v342 = vsel %vm332, %v331, 0.0
        %343 = vadd.xlane.f32.xlu0 %v342
        %v344 = vpop.xlane.xlu0 %343
        %v349 = vlaneseq
        %v350 = vand.u32 %v349, 127
        %v351 = vperm.slane %v335, %v350
        %v352 = vperm.slane %v338, %v350
        %v353 = vperm.slane %v341, %v350
        %v354 = vperm.slane %v344, %v350
        %vm355 = vcmask 1041409
        %v356 = vsel %vm355, %v352, %v351
        %vm357 = vcmask 1042434
        %v358 = vsel %vm357, %v353, %v356
        %vm359 = vcmask 1043459
        %v360 = vsel %vm359, %v354, %v358
        %vm362 = vcmask 11264
        %v363 = vsel %vm362, %v360, 0.0
        %364 = vadd.xlane.f32.xlu0 %v363
        %v365 = vpop.xlane.xlu0 %364
        %v366 = vadd.f32 %v323, %v365
        %vm367 = vcmask 3072
        %368 = vst.msk [vmem:[%s290] sm:$0xf] %vm367, %v366
        %v369 = vld [vmem:[%s294] sm:$0xf]
        %v370 = vsub.f32 %v307, %v315
        %v371 = vsub.f32 %v308, %v316
        %v372 = vsub.f32 %v309, %v317
        %v373 = vsub.f32 %v310, %v318
        %v374 = vsel %vm332, %v370, 0.0
        %375 = vadd.xlane.f32.xlu0 %v374
        %v376 = vpop.xlane.xlu0 %375
        %v377 = vsel %vm332, %v371, 0.0
        %378 = vadd.xlane.f32.xlu0 %v377
        %v379 = vpop.xlane.xlu0 %378
        %v380 = vsel %vm332, %v372, 0.0
        %381 = vadd.xlane.f32.xlu0 %v380
        %v382 = vpop.xlane.xlu0 %381
        %v383 = vsel %vm332, %v373, 0.0
        %384 = vadd.xlane.f32.xlu0 %v383
        %v385 = vpop.xlane.xlu0 %384
        %v390 = vperm.slane %v376, %v350
        %v391 = vperm.slane %v379, %v350
        %v392 = vperm.slane %v382, %v350
        %v393 = vperm.slane %v385, %v350
        %v394 = vsel %vm355, %v391, %v390
        %v395 = vsel %vm357, %v392, %v394
        %v396 = vsel %vm359, %v393, %v395
        %v398 = vsel %vm362, %v396, 0.0
        %399 = vadd.xlane.f32.xlu0 %v398
        %v400 = vpop.xlane.xlu0 %399
        %v401 = vadd.f32 %v369, %v400
        %402 = vst.msk [vmem:[%s294] sm:$0xf] %vm367, %v401
        %v403 = vld [vmem:[%s298] sm:$0xf]
        %v404 = vsub.f32 %v311, %v315
        %v405 = vsub.f32 %v312, %v316
        %v406 = vsub.f32 %v313, %v317
        %v407 = vsub.f32 %v314, %v318
        %v408 = vsel %vm332, %v404, 0.0
        %409 = vadd.xlane.f32.xlu0 %v408
        %v410 = vpop.xlane.xlu0 %409
        %v411 = vsel %vm332, %v405, 0.0
        %412 = vadd.xlane.f32.xlu0 %v411
        %v413 = vpop.xlane.xlu0 %412
        %v414 = vsel %vm332, %v406, 0.0
        %415 = vadd.xlane.f32.xlu0 %v414
        %v416 = vpop.xlane.xlu0 %415
        %v417 = vsel %vm332, %v407, 0.0
        %418 = vadd.xlane.f32.xlu0 %v417
        %v419 = vpop.xlane.xlu0 %418
        %v424 = vperm.slane %v410, %v350
        %v425 = vperm.slane %v413, %v350
        %v426 = vperm.slane %v416, %v350
        %v427 = vperm.slane %v419, %v350
        %v428 = vsel %vm355, %v425, %v424
        %v429 = vsel %vm357, %v426, %v428
        %v430 = vsel %vm359, %v427, %v429
        %v432 = vsel %vm362, %v430, 0.0
        %433 = vadd.xlane.f32.xlu0 %v432
        %v434 = vpop.xlane.xlu0 %433
        %v435 = vadd.f32 %v403, %v434
        %436 = vst.msk [vmem:[%s298] sm:$0xf] %vm367, %v435
        %p437 = scmp.lt.s32.totalorder %s26, 1
        %s438 = scalar_select %p437, %s26, 1
        %s439 = smul.addr %s438, 4
        %s440 = scalar_lea.vmem %s2, %s439
        %p441 = scmp.lt.s32.totalorder %s26, 1
        %s442 = scalar_select %p441, %s26, 1
        %s443 = smul.addr %s442, 4
        %s444 = scalar_lea.vmem %s3, %s443
        %p445 = scmp.lt.s32.totalorder %s26, 1
        %s446 = scalar_select %p445, %s26, 1
        %s447 = smul.addr %s446, 4
        %s448 = scalar_lea.vmem %s4, %s447
        // Predicated region
        $region41: #{tpu_custom_call.1} parent=27 // pred_check
          %p449 = pneg %p108
        $region42: #{tpu_custom_call.1} parent=27 // pred_check_branch
          %451 = sbr.rel (%p449) target = $region44
        $region43: #{tpu_custom_call.1} parent=27 // pred_region
          _
        $region44: #{tpu_custom_call.1} parent=27 // pred_fallthru
          _
        // Predicated region
        $region45: #{tpu_custom_call.1} parent=27 // pred_check
          %p452 = pneg %p134
        $region46: #{tpu_custom_call.1} parent=27 // pred_check_branch
          %454 = sbr.rel (%p452) target = $region48
        $region47: #{tpu_custom_call.1} parent=27 // pred_region
          _
        $region48: #{tpu_custom_call.1} parent=27 // pred_fallthru
          _
        // Predicated region
        $region49: #{tpu_custom_call.1} parent=27 // pred_check
          %p455 = pneg %p160
        $region50: #{tpu_custom_call.1} parent=27 // pred_check_branch
          %457 = sbr.rel (%p455) target = $region52
        $region51: #{tpu_custom_call.1} parent=27 // pred_region
          _
        $region52: #{tpu_custom_call.1} parent=27 // pred_fallthru
          _
      $region28: #{tpu_custom_call.1} parent=5 // pred_fallthru
        _
      %p458 = scmp.le.s32.totalorder 2, %s17
      // Predicated region
      $region53: #{tpu_custom_call.1} parent=5 // pred_check
        %p459 = pneg %p458
      $region54: #{tpu_custom_call.1} parent=5 // pred_check_branch
        %461 = sbr.rel (%p459) target = $region56
      $region55: #{tpu_custom_call.1} parent=5 // pred_region
        %s462 = ssub.s32 %s17, 2
        // Predicated region
        $region57: #{tpu_custom_call.1} parent=55 // pred_check
          %p463 = pneg %p114
        $region58: #{tpu_custom_call.1} parent=55 // pred_check_branch
          %465 = sbr.rel (%p463) target = $region60
        $region59: #{tpu_custom_call.1} parent=55 // pred_region
          %p466 = scmp.lt.s32.totalorder %s28, 1
          %s467 = scalar_select %p466, %s28, 1
          %s468 = smul.addr %s467, 4
          %s469 = scalar_lea.vmem %s2, %s468
        $region60: #{tpu_custom_call.1} parent=55 // pred_fallthru
          _
        // Predicated region
        $region61: #{tpu_custom_call.1} parent=55 // pred_check
          %p470 = pneg %p140
        $region62: #{tpu_custom_call.1} parent=55 // pred_check_branch
          %472 = sbr.rel (%p470) target = $region64
        $region63: #{tpu_custom_call.1} parent=55 // pred_region
          %p473 = scmp.lt.s32.totalorder %s28, 1
          %s474 = scalar_select %p473, %s28, 1
          %s475 = smul.addr %s474, 4
          %s476 = scalar_lea.vmem %s3, %s475
        $region64: #{tpu_custom_call.1} parent=55 // pred_fallthru
          _
        // Predicated region
        $region65: #{tpu_custom_call.1} parent=55 // pred_check
          %p477 = pneg %p166
        $region66: #{tpu_custom_call.1} parent=55 // pred_check_branch
          %479 = sbr.rel (%p477) target = $region68
        $region67: #{tpu_custom_call.1} parent=55 // pred_region
          %p480 = scmp.lt.s32.totalorder %s28, 1
          %s481 = scalar_select %p480, %s28, 1
          %s482 = smul.addr %s481, 4
          %s483 = scalar_lea.vmem %s4, %s482
        $region68: #{tpu_custom_call.1} parent=55 // pred_fallthru
          _
      $region56: #{tpu_custom_call.1} parent=5 // pred_fallthru
        _
    $region6: #{tpu_custom_call.1} parent=1 // loop_footer
      %s21 = sadd.s32 1, %s17
    $region7: #{tpu_custom_call.1} parent=1 // loop_footer_branch
      %16 = sbr.rel target = $region3
    $region8: #{tpu_custom_call.1} parent=1 // loop_exit
      _
    %484 = vsyncpa [#allocation3], 1
    %s485 = scalar_lea.sflag [#allocation3], 1
    %486 = vsyncpa %s485, 1
    %487 = vsyncpa [#allocation5], 1
    %s488 = scalar_lea.sflag [#allocation5], 1
    %489 = vsyncpa %s488, 1

</llo_original>
